<compile_context>
chip_gen: v5e
topology: v5e:2x2
jax: 0.10.0
libtpu: 0.0.40
codegen_flags: <defaults>
</compile_context>

<pallas_src>
import numpy as np
import jax
import jax.numpy as jnp
from jax.experimental import pallas as pl
from jax.experimental.pallas import tpu as pltpu

# ----------------------------- configuration -----------------------------
B_IMG = 2          # image batch
C     = 4          # image channels
H = W = 16         # image spatial
PATCH = 8          # conv kernel == stride (patchify conv)
NPATCH = (H // PATCH) * (W // PATCH)
KPATCH = C * PATCH * PATCH          # 256 (already a multiple of 128)

IMG_DIM = 48       # image_shape (CNN embedding dim)
TXT_DIM = 32       # text_shape  (shared CLIP embedding dim) -> projection used

B_TXT = 2          # number of text descriptions
SEQ   = 8          # tokens per text
VOCAB = 50         # vocab size

LANE = 128         # lane-dense padding width for all embedding dims

VMEM = pltpu.MemorySpace.VMEM
SMEM = pltpu.MemorySpace.SMEM


def _vspec():
    return pl.BlockSpec(memory_space=VMEM)


def _pad_to(x, shape):
    """Zero-pad trailing edges of x up to `shape` (layout plumbing only)."""
    return jnp.pad(x, [(0, t - s) for s, t in zip(x.shape, shape)])


# ------------------------------- fused kernel ----------------------------

def clip_fused_kernel(patch_ref, tok_ref, w_pe_ref, b_pe_ref,
                      w_t_ref, b_t_ref, w_proj_ref, b_proj_ref, ls_ref,
                      logits_ref, img_feat_ref, txt_feat_ref):
    # ---- image branch -------------------------------------------------
    # patches: [B_IMG, NPATCH, C*p*p]; mean over patches commutes with the
    # linear patch conv, so reduce first (VPU) then one MXU matmul.
    patch_mean = jnp.mean(patch_ref[...], axis=1)                     # [B_IMG, 256]
    img_emb = jnp.dot(patch_mean, w_pe_ref[...],
                      preferred_element_type=jnp.float32) + b_pe_ref[...]   # [B_IMG, 128]

    # ---- text branch ---------------------------------------------------
    # tok: [B_TXT, SEQ, 128]; mean pool over tokens, then Linear.
    tok_mean = jnp.mean(tok_ref[...], axis=1)                         # [B_TXT, 128]
    txt_emb = jnp.dot(tok_mean, w_t_ref[...],
                      preferred_element_type=jnp.float32) + b_t_ref[...]    # [B_TXT, 128]

    # ---- CLIP head -----------------------------------------------------
    # Projection (image_shape != text_shape branch of CLIP.__init__).
    img_proj = jnp.dot(img_emb, w_proj_ref[...],
                       preferred_element_type=jnp.float32) + b_proj_ref[...]

    # L2 normalize with rsqrt (EUP) instead of sqrt + divide (VALU).
    # Padded lanes are exactly zero, so the full-lane reduce is correct.
    img_feat = img_proj * jax.lax.rsqrt(
        jnp.sum(img_proj * img_proj, axis=-1, keepdims=True))
    txt_feat = txt_emb * jax.lax.rsqrt(
        jnp.sum(txt_emb * txt_emb, axis=-1, keepdims=True))

    # Single similarity matmul; logits_text is taken as the exact transpose
    # in the wrapper.  exp(logit_scale) applied once to the [2,2] result.
    scale = jnp.exp(ls_ref[0, 0])
    logits_ref[...] = scale * jax.lax.dot_general(
        img_feat, txt_feat, (((1,), (1,)), ((), ())),
        preferred_element_type=jnp.float32)

    img_feat_ref[...] = img_feat
    txt_feat_ref[...] = txt_feat


def clip_fused_pallas(patches, tok_emb_p, w_pe_p, b_pe_p, w_t_p, b_t_p,
                      w_proj_p, b_proj_p, logit_scale):
    return pl.pallas_call(
        clip_fused_kernel,
        out_shape=(
            jax.ShapeDtypeStruct((B_IMG, B_TXT), jnp.float32),   # logits_image
            jax.ShapeDtypeStruct((B_IMG, LANE), jnp.float32),    # image_features (padded)
            jax.ShapeDtypeStruct((B_TXT, LANE), jnp.float32),    # text_features  (padded)
        ),
        in_specs=[_vspec()] * 8 + [pl.BlockSpec(memory_space=SMEM)],
        out_specs=(_vspec(), _vspec(), _vspec()),
    )(patches, tok_emb_p, w_pe_p, b_pe_p, w_t_p, b_t_p,
      w_proj_p, b_proj_p, logit_scale)


# ------------------------------- wrappers --------------------------------

def extract_patches(x):
    # x: [B, C, H, W] NCHW -> [B, NPATCH, C*p*p], channel-major per patch
    # (matches the flattening order of a PyTorch Conv2d weight [D, C, p, p]).
    B, Cc, Hh, Ww = x.shape
    hp, wp = Hh // PATCH, Ww // PATCH
    x = x.reshape(B, Cc, hp, PATCH, wp, PATCH)
    x = x.transpose(0, 2, 4, 1, 3, 5)          # [B, hp, wp, C, p, p]
    return x.reshape(B, hp * wp, Cc * PATCH * PATCH)


def clip_forward(image, tokens, params):
    """Full CLIP.forward: returns (logits_image, logits_text, (img_feat, txt_feat))."""
    # Layout plumbing outside the kernel: patch extraction, token-embedding
    # lookup, and zero-padding of all lane dims to 128.
    patches = extract_patches(image)                                  # [B, P, 256]
    tok_emb = jnp.take(params["emb_table"], tokens, axis=0)           # [B, S, TXT_DIM]
    tok_emb_p = _pad_to(tok_emb, (B_TXT, SEQ, LANE))

    w_pe_p   = _pad_to(params["w_pe"],   (KPATCH, LANE))
    b_pe_p   = _pad_to(params["b_pe"],   (1, LANE))
    w_t_p    = _pad_to(params["w_t"],    (LANE, LANE))
    b_t_p    = _pad_to(params["b_t"],    (1, LANE))
    w_proj_p = _pad_to(params["w_proj"], (LANE, LANE))
    b_proj_p = _pad_to(params["b_proj"], (1, LANE))

    logits_image, img_feat_p, txt_feat_p = clip_fused_pallas(
        patches, tok_emb_p, w_pe_p, b_pe_p, w_t_p, b_t_p,
        w_proj_p, b_proj_p, params["logit_scale"])

    logits_text = logits_image.T            # exact transpose (PyTorch semantics)
    return logits_image, logits_text, (img_feat_p[:, :TXT_DIM],
                                       txt_feat_p[:, :TXT_DIM])


# ------------------------------ reference --------------------------------

def clip_forward_ref(image, tokens, params):
    patches = extract_patches(image)                                           # [B, P, K]
    img_emb = jnp.mean(patches @ params["w_pe"] + params["b_pe"], axis=1)      # conv -> pool
    tok_emb = jnp.take(params["emb_table"], tokens, axis=0)                    # [B, S, D]
    txt_emb = jnp.mean(tok_emb, axis=1) @ params["w_t"] + params["b_t"]
    img_proj = img_emb @ params["w_proj"] + params["b_proj"]
    img_f = img_proj / jnp.sqrt(jnp.sum(img_proj ** 2, axis=-1, keepdims=True))
    txt_f = txt_emb / jnp.sqrt(jnp.sum(txt_emb ** 2, axis=-1, keepdims=True))
    scale = jnp.exp(params["logit_scale"][0, 0])
    li = scale * (img_f @ txt_f.T)
    return li, li.T, (img_f, txt_f)


# --------------------------------- main -----------------------------------

if __name__ == "__main__":
    key = jax.random.PRNGKey(0)
    k_img, k_tok, k_conv, k_emb, k_t, k_proj = jax.random.split(key, 6)

    # inputs
    image = jax.random.normal(k_img, (B_IMG, C, H, W), dtype=jnp.float32)
    tokens = jax.random.randint(k_tok, (B_TXT, SEQ), 0, VOCAB)

    # deterministic parameters (unpadded "module" parameters)
    w_conv = 0.05 * jax.random.normal(k_conv, (IMG_DIM, C, PATCH, PATCH), jnp.float32)
    params = {
        # conv weight flattened to matmul form: [C*p*p, IMG_DIM]
        "w_pe": w_conv.reshape(IMG_DIM, KPATCH).T,
        "b_pe": 0.01 * jnp.ones((1, IMG_DIM), jnp.float32),
        "emb_table": 0.05 * jax.random.normal(k_emb, (VOCAB, TXT_DIM), jnp.float32),
        "w_t": 0.05 * jax.random.normal(k_t, (TXT_DIM, TXT_DIM), jnp.float32),
        "b_t": 0.01 * jnp.ones((1, TXT_DIM), jnp.float32),
        "w_proj": 0.05 * jax.random.normal(k_proj, (IMG_DIM, TXT_DIM), jnp.float32),
        "b_proj": 0.01 * jnp.ones((1, TXT_DIM), jnp.float32),
        "logit_scale": jnp.full((1, 1), np.log(1.0 / 0.07), jnp.float32),
    }

    logits_image, logits_text, (img_feat, txt_feat) = jax.block_until_ready(
        clip_forward(image, tokens, params))

    li_ref, lt_ref, (if_ref, tf_ref) = clip_forward_ref(image, tokens, params)
    np.testing.assert_allclose(np.asarray(logits_image), np.asarray(li_ref),
                               rtol=1e-4, atol=1e-4)
    np.testing.assert_allclose(np.asarray(logits_text), np.asarray(lt_ref),
                               rtol=1e-4, atol=1e-4)
    np.testing.assert_allclose(np.asarray(img_feat), np.asarray(if_ref),
                               rtol=1e-4, atol=1e-5)
    np.testing.assert_allclose(np.asarray(txt_feat), np.asarray(tf_ref),
                               rtol=1e-4, atol=1e-5)

    print("KERNEL_OK")
</pallas_src>

<mosaic_0001>
module attributes {stable_mosaic.version = 11 : i64} {
  func.func @clip_fused_kernel(%arg0: memref<2x4x256xf32, #tpu.memory_space<vmem>>, %arg1: memref<2x8x128xf32, #tpu.memory_space<vmem>>, %arg2: memref<256x128xf32, #tpu.memory_space<vmem>>, %arg3: memref<1x128xf32, #tpu.memory_space<vmem>>, %arg4: memref<128x128xf32, #tpu.memory_space<vmem>>, %arg5: memref<1x128xf32, #tpu.memory_space<vmem>>, %arg6: memref<128x128xf32, #tpu.memory_space<vmem>>, %arg7: memref<1x128xf32, #tpu.memory_space<vmem>>, %arg8: memref<1x1xf32, #tpu.memory_space<smem>>, %arg9: memref<2x2xf32, #tpu.memory_space<vmem>>, %arg10: memref<2x128xf32, #tpu.memory_space<vmem>>, %arg11: memref<2x128xf32, #tpu.memory_space<vmem>>) attributes {dimension_semantics = [], scalar_prefetch = 0 : i64, scratch_operands = 0 : i64, tpu.core_type = #tpu.core_type<tc>} {
    %c0 = arith.constant 0 : index
    %c0_0 = arith.constant 0 : index
    %c0_1 = arith.constant 0 : index
    %0 = vector.load %arg0[%c0, %c0_0, %c0_1] : memref<2x4x256xf32, #tpu.memory_space<vmem>>, vector<2x4x256xf32>
    %cst = arith.constant dense<0.000000e+00> : vector<2x256xf32>
    %1 = vector.multi_reduction <add>, %0, %cst [1] : vector<2x4x256xf32> to vector<2x256xf32>
    %cst_2 = arith.constant 4.000000e+00 : f32
    %2 = vector.broadcast %cst_2 : f32 to vector<2x256xf32>
    %3 = arith.divf %1, %2 : vector<2x256xf32>
    %c0_3 = arith.constant 0 : index
    %c0_4 = arith.constant 0 : index
    %4 = vector.load %arg2[%c0_3, %c0_4] : memref<256x128xf32, #tpu.memory_space<vmem>>, vector<256x128xf32>
    %cst_5 = arith.constant dense<0.000000e+00> : vector<2x128xf32>
    %5 = tpu.matmul %3, %4, %cst_5 {dimension_numbers = #tpu.dot_dimension_numbers<[1], [0], [0], [1], [0, 0, 1, 1], [], []>} : vector<2x256xf32>, vector<256x128xf32>, vector<2x128xf32> -> vector<2x128xf32>
    %c0_6 = arith.constant 0 : index
    %c0_7 = arith.constant 0 : index
    %6 = vector.load %arg3[%c0_6, %c0_7] : memref<1x128xf32, #tpu.memory_space<vmem>>, vector<1x128xf32>
    %7 = vector.broadcast %6 : vector<1x128xf32> to vector<2x128xf32>
    %8 = arith.addf %5, %7 : vector<2x128xf32>
    %c0_8 = arith.constant 0 : index
    %c0_9 = arith.constant 0 : index
    %c0_10 = arith.constant 0 : index
    %9 = vector.load %arg1[%c0_8, %c0_9, %c0_10] : memref<2x8x128xf32, #tpu.memory_space<vmem>>, vector<2x8x128xf32>
    %cst_11 = arith.constant dense<0.000000e+00> : vector<2x128xf32>
    %10 = vector.multi_reduction <add>, %9, %cst_11 [1] : vector<2x8x128xf32> to vector<2x128xf32>
    %cst_12 = arith.constant 8.000000e+00 : f32
    %11 = vector.broadcast %cst_12 : f32 to vector<2x128xf32>
    %12 = arith.divf %10, %11 : vector<2x128xf32>
    %c0_13 = arith.constant 0 : index
    %c0_14 = arith.constant 0 : index
    %13 = vector.load %arg4[%c0_13, %c0_14] : memref<128x128xf32, #tpu.memory_space<vmem>>, vector<128x128xf32>
    %cst_15 = arith.constant dense<0.000000e+00> : vector<2x128xf32>
    %14 = tpu.matmul %12, %13, %cst_15 {dimension_numbers = #tpu.dot_dimension_numbers<[1], [0], [0], [1], [0, 0, 1, 1], [], []>} : vector<2x128xf32>, vector<128x128xf32>, vector<2x128xf32> -> vector<2x128xf32>
    %c0_16 = arith.constant 0 : index
    %c0_17 = arith.constant 0 : index
    %15 = vector.load %arg5[%c0_16, %c0_17] : memref<1x128xf32, #tpu.memory_space<vmem>>, vector<1x128xf32>
    %16 = vector.broadcast %15 : vector<1x128xf32> to vector<2x128xf32>
    %17 = arith.addf %14, %16 : vector<2x128xf32>
    %c0_18 = arith.constant 0 : index
    %c0_19 = arith.constant 0 : index
    %18 = vector.load %arg6[%c0_18, %c0_19] : memref<128x128xf32, #tpu.memory_space<vmem>>, vector<128x128xf32>
    %cst_20 = arith.constant dense<0.000000e+00> : vector<2x128xf32>
    %19 = tpu.matmul %8, %18, %cst_20 {dimension_numbers = #tpu.dot_dimension_numbers<[1], [0], [0], [1], [0, 0, 1, 1], [], []>} : vector<2x128xf32>, vector<128x128xf32>, vector<2x128xf32> -> vector<2x128xf32>
    %c0_21 = arith.constant 0 : index
    %c0_22 = arith.constant 0 : index
    %20 = vector.load %arg7[%c0_21, %c0_22] : memref<1x128xf32, #tpu.memory_space<vmem>>, vector<1x128xf32>
    %21 = vector.broadcast %20 : vector<1x128xf32> to vector<2x128xf32>
    %22 = arith.addf %19, %21 : vector<2x128xf32>
    %23 = arith.mulf %22, %22 : vector<2x128xf32>
    %cst_23 = arith.constant dense<0.000000e+00> : vector<2xf32>
    %24 = vector.multi_reduction <add>, %23, %cst_23 [1] : vector<2x128xf32> to vector<2xf32>
    %25 = vector.shape_cast %24 : vector<2xf32> to vector<2x1xf32>
    %26 = math.rsqrt %25 : vector<2x1xf32>
    %27 = vector.broadcast %26 : vector<2x1xf32> to vector<2x128xf32>
    %28 = arith.mulf %22, %27 : vector<2x128xf32>
    %29 = arith.mulf %17, %17 : vector<2x128xf32>
    %cst_24 = arith.constant dense<0.000000e+00> : vector<2xf32>
    %30 = vector.multi_reduction <add>, %29, %cst_24 [1] : vector<2x128xf32> to vector<2xf32>
    %31 = vector.shape_cast %30 : vector<2xf32> to vector<2x1xf32>
    %32 = math.rsqrt %31 : vector<2x1xf32>
    %33 = vector.broadcast %32 : vector<2x1xf32> to vector<2x128xf32>
    %34 = arith.mulf %17, %33 : vector<2x128xf32>
    %c0_25 = arith.constant 0 : index
    %c0_26 = arith.constant 0 : index
    %35 = memref.load %arg8[%c0_25, %c0_26] : memref<1x1xf32, #tpu.memory_space<smem>>
    %36 = math.exp %35 : f32
    %cst_27 = arith.constant dense<0.000000e+00> : vector<2x2xf32>
    %37 = tpu.matmul %28, %34, %cst_27 {dimension_numbers = #tpu.dot_dimension_numbers<[1], [1], [0], [0], [0, 0, 1, 0], [], []>} : vector<2x128xf32>, vector<2x128xf32>, vector<2x2xf32> -> vector<2x2xf32>
    %38 = vector.broadcast %36 : f32 to vector<2x2xf32>
    %39 = arith.mulf %38, %37 : vector<2x2xf32>
    %c0_28 = arith.constant 0 : index
    %c0_29 = arith.constant 0 : index
    %40 = vector.load %arg9[%c0_28, %c0_29] : memref<2x2xf32, #tpu.memory_space<vmem>>, vector<2x2xf32>
    tpu.vector_store %arg9[%c0_28, %c0_29], %39 {strides = array<i32>} : memref<2x2xf32, #tpu.memory_space<vmem>>, vector<2x2xf32>,
    %c0_30 = arith.constant 0 : index
    %c0_31 = arith.constant 0 : index
    %41 = vector.load %arg10[%c0_30, %c0_31] : memref<2x128xf32, #tpu.memory_space<vmem>>, vector<2x128xf32>
    tpu.vector_store %arg10[%c0_30, %c0_31], %28 {strides = array<i32>} : memref<2x128xf32, #tpu.memory_space<vmem>>, vector<2x128xf32>,
    %c0_32 = arith.constant 0 : index
    %c0_33 = arith.constant 0 : index
    %42 = vector.load %arg11[%c0_32, %c0_33] : memref<2x128xf32, #tpu.memory_space<vmem>>, vector<2x128xf32>
    tpu.vector_store %arg11[%c0_32, %c0_33], %34 {strides = array<i32>} : memref<2x128xf32, #tpu.memory_space<vmem>>, vector<2x128xf32>,
    return
  }
}

</mosaic_0001>

<llo_original>
// kernel: tpu_custom_call.1
$region0: #{tpu_custom_call.1}
  #allocation0 [shape = 'u32[]', space=smem, size = 0x4, offset = 0x4, fixed_abs, tag = 'smem constant byte address 0x4 - core index']
  #allocation1 [shape = 'u32[72,128]{1,0:T(1,128)}', space=vmem, size = 0x9000, scoped, tag = 'internal scratch']
  #allocation2 [shape = 'f32[1,1]{1,0:T(1,128)S(6)}', space=smem, size = 0x200, scoped, tag = 'scoped memory for tpu_custom_call.1']
  %s0 = inlined_call_operand.hbm [shape: f32[2,4,256], index: 0, kind: input, shape index: {}]
  %s1 = inlined_call_operand.hbm [shape: f32[2,8,128], index: 1, kind: input, shape index: {}]
  %s2 = inlined_call_operand.hbm [shape: f32[256,128], index: 2, kind: input, shape index: {}]
  %s3 = inlined_call_operand.vmem [shape: f32[1,128], index: 3, kind: input, shape index: {}]
  %s4 = inlined_call_operand.hbm [shape: f32[128,128], index: 4, kind: input, shape index: {}]
  %s5 = inlined_call_operand.vmem [shape: f32[1,128], index: 5, kind: input, shape index: {}]
  %s6 = inlined_call_operand.hbm [shape: f32[128,128], index: 6, kind: input, shape index: {}]
  %s7 = inlined_call_operand.vmem [shape: f32[1,128], index: 7, kind: input, shape index: {}]
  %s8 = inlined_call_operand.<no memory space> [shape: f32[1,1], index: 8, kind: input, shape index: {}]
  %s9 = inlined_call_operand.hbm [shape: f32[2,2], index: 9, kind: output, shape index: {0}]
  %s10 = inlined_call_operand.hbm [shape: f32[2,128], index: 10, kind: output, shape index: {1}]
  %s11 = inlined_call_operand.hbm [shape: f32[2,128], index: 11, kind: output, shape index: {2}]
  %12 = xla_tuple %s9, %s10, %s11
  %s13 = sld [smem:[#allocation0]]
  $region82: #{tpu_custom_call.1} parent=0
    _
  %s15 = ssub.s32 1, %s13
  %s16 = scalar_select 0, %s15, %s13
  %17 = sst [smem:[#allocation2]] %s8
  $region1: #{tpu_custom_call.1} parent=0
    #allocation3 [shape = 'u8[8192]{0}', space=vmem, size = 0x2000, scoped, tag = 'input window, operand 0, single buffered']
    #allocation4 [shape = 's32[1]{0}', space=sflag, size = 0x4, scoped, tag = 'scoped memory for tpu_custom_call.1']
    #allocation5 [shape = 's32[1]{0}', space=sflag, size = 0x4, scoped, tag = 'scoped memory for tpu_custom_call.1']
    #allocation6 [shape = 'u8[8192]{0}', space=vmem, size = 0x2000, scoped, tag = 'input window, operand 1, single buffered']
    #allocation7 [shape = 's32[1]{0}', space=sflag, size = 0x4, scoped, tag = 'scoped memory for tpu_custom_call.1']
    #allocation8 [shape = 'u8[131072]{0}', space=vmem, size = 0x20000, scoped, tag = 'input window, operand 2, single buffered']
    #allocation9 [shape = 'u8[65536]{0}', space=vmem, size = 0x10000, scoped, tag = 'input window, operand 4, single buffered']
    #allocation10 [shape = 's32[1]{0}', space=sflag, size = 0x4, scoped, tag = 'scoped memory for tpu_custom_call.1']
    #allocation11 [shape = 'u8[65536]{0}', space=vmem, size = 0x10000, scoped, tag = 'input window, operand 6, single buffered']
    #allocation12 [shape = 'u8[1024]{0}', space=vmem, size = 0x400, scoped, tag = 'output window, operand 0, single buffered']
    #allocation13 [shape = 'u8[1024]{0}', space=vmem, size = 0x400, scoped, tag = 'output window, operand 1, single buffered']
    #allocation14 [shape = 's32[1]{0}', space=sflag, size = 0x4, scoped, tag = 'scoped memory for tpu_custom_call.1']
    #allocation15 [shape = 'u8[1024]{0}', space=vmem, size = 0x400, scoped, tag = 'output window, operand 2, single buffered']
    %18 = vsyncpa [#allocation4], 0
    %19 = vsyncpa [#allocation7], 0
    %20 = vsyncpa [#allocation10], 0
    %21 = vsyncpa [#allocation5], 0
    %22 = vsyncpa [#allocation14], 0
    // Predicated region
    $region2: #{tpu_custom_call.1} parent=1 // pred_check
      _
    $region3: #{tpu_custom_call.1} parent=1 // pred_check_branch
      %24 = sbr.rel (0) target = $region5
    $region4: #{tpu_custom_call.1} parent=1 // pred_region
      %26 = vsyncadd [#allocation4], 0
      %s27 = sshll.u32 %s0, 4
      %s28 = int_to_ptr.hbm [resolvable:$true] %s27
      %s29 = sshll.u32 [#allocation3], 4
      %s30 = int_to_ptr.vmem [resolvable:$true] %s29
      %35 = dma.hbm_to_vmem [thread:$0]  %s28, 256, %s30, [#allocation4], 128, 128, 8
    $region5: #{tpu_custom_call.1} parent=1 // pred_fallthru
      _
    // Predicated region
    $region6: #{tpu_custom_call.1} parent=1 // pred_check
      _
    $region7: #{tpu_custom_call.1} parent=1 // pred_check_branch
      %37 = sbr.rel (0) target = $region9
    $region8: #{tpu_custom_call.1} parent=1 // pred_region
      %39 = vsyncadd [#allocation7], 0
      %s40 = sshll.u32 %s1, 4
      %s41 = int_to_ptr.hbm [resolvable:$true] %s40
      %s42 = sshll.u32 [#allocation6], 4
      %s43 = int_to_ptr.vmem [resolvable:$true] %s42
      %48 = dma.hbm_to_vmem [thread:$0]  %s41, 256, %s43, [#allocation7], 128, 128, 8
    $region9: #{tpu_custom_call.1} parent=1 // pred_fallthru
      _
    // Predicated region
    $region10: #{tpu_custom_call.1} parent=1 // pred_check
      _
    $region11: #{tpu_custom_call.1} parent=1 // pred_check_branch
      %50 = sbr.rel (0) target = $region13
    $region12: #{tpu_custom_call.1} parent=1 // pred_region
      %52 = vsyncadd [#allocation7], 0
      %s53 = sshll.u32 %s2, 4
      %s54 = int_to_ptr.hbm [resolvable:$true] %s53
      %s55 = sshll.u32 [#allocation8], 4
      %s56 = int_to_ptr.vmem [resolvable:$true] %s55
      %61 = dma.hbm_to_vmem [thread:$0]  %s54, 4096, %s56, [#allocation7], 128, 128, 8
    $region13: #{tpu_custom_call.1} parent=1 // pred_fallthru
      _
    // Predicated region
    $region14: #{tpu_custom_call.1} parent=1 // pred_check
      _
    $region15: #{tpu_custom_call.1} parent=1 // pred_check_branch
      %63 = sbr.rel (0) target = $region17
    $region16: #{tpu_custom_call.1} parent=1 // pred_region
      _
    $region17: #{tpu_custom_call.1} parent=1 // pred_fallthru
      _
    // Predicated region
    $region18: #{tpu_custom_call.1} parent=1 // pred_check
      _
    $region19: #{tpu_custom_call.1} parent=1 // pred_check_branch
      %65 = sbr.rel (0) target = $region21
    $region20: #{tpu_custom_call.1} parent=1 // pred_region
      %67 = vsyncadd [#allocation10], 0
      %s68 = sshll.u32 %s4, 4
      %s69 = int_to_ptr.hbm [resolvable:$true] %s68
      %s70 = sshll.u32 [#allocation9], 4
      %s71 = int_to_ptr.vmem [resolvable:$true] %s70
      %76 = dma.hbm_to_vmem [thread:$0]  %s69, 2048, %s71, [#allocation10], 128, 128, 8
    $region21: #{tpu_custom_call.1} parent=1 // pred_fallthru
      _
    // Predicated region
    $region22: #{tpu_custom_call.1} parent=1 // pred_check
      _
    $region23: #{tpu_custom_call.1} parent=1 // pred_check_branch
      %78 = sbr.rel (0) target = $region25
    $region24: #{tpu_custom_call.1} parent=1 // pred_region
      _
    $region25: #{tpu_custom_call.1} parent=1 // pred_fallthru
      _
    // Predicated region
    $region26: #{tpu_custom_call.1} parent=1 // pred_check
      _
    $region27: #{tpu_custom_call.1} parent=1 // pred_check_branch
      %80 = sbr.rel (0) target = $region29
    $region28: #{tpu_custom_call.1} parent=1 // pred_region
      %82 = vsyncadd [#allocation10], 0
      %s83 = sshll.u32 %s6, 4
      %s84 = int_to_ptr.hbm [resolvable:$true] %s83
      %s85 = sshll.u32 [#allocation11], 4
      %s86 = int_to_ptr.vmem [resolvable:$true] %s85
      %91 = dma.hbm_to_vmem [thread:$0]  %s84, 2048, %s86, [#allocation10], 128, 128, 8
    $region29: #{tpu_custom_call.1} parent=1 // pred_fallthru
      _
    // Predicated region
    $region30: #{tpu_custom_call.1} parent=1 // pred_check
      _
    $region31: #{tpu_custom_call.1} parent=1 // pred_check_branch
      %93 = sbr.rel (0) target = $region33
    $region32: #{tpu_custom_call.1} parent=1 // pred_region
      _
    $region33: #{tpu_custom_call.1} parent=1 // pred_fallthru
      _
    // Predicated region
    $region34: #{tpu_custom_call.1} parent=1 // pred_check
      _
    $region35: #{tpu_custom_call.1} parent=1 // pred_check_branch
      %95 = sbr.rel (0) target = $region37
    $region36: #{tpu_custom_call.1} parent=1 // pred_region
      _
    $region37: #{tpu_custom_call.1} parent=1 // pred_fallthru
      _
    // Predicated region
    $region38: #{tpu_custom_call.1} parent=1 // pred_check
      _
    $region39: #{tpu_custom_call.1} parent=1 // pred_check_branch
      %97 = sbr.rel (0) target = $region41
    $region40: #{tpu_custom_call.1} parent=1 // pred_region
      %99 = dma.done [#allocation4], 256
    $region41: #{tpu_custom_call.1} parent=1 // pred_fallthru
      _
    // Predicated region
    $region42: #{tpu_custom_call.1} parent=1 // pred_check
      _
    $region43: #{tpu_custom_call.1} parent=1 // pred_check_branch
      %101 = sbr.rel (0) target = $region45
    $region44: #{tpu_custom_call.1} parent=1 // pred_region
      %103 = dma.done [#allocation7], 256
    $region45: #{tpu_custom_call.1} parent=1 // pred_fallthru
      _
    // Predicated region
    $region46: #{tpu_custom_call.1} parent=1 // pred_check
      _
    $region47: #{tpu_custom_call.1} parent=1 // pred_check_branch
      %105 = sbr.rel (0) target = $region49
    $region48: #{tpu_custom_call.1} parent=1 // pred_region
      %107 = dma.done [#allocation7], 4096
    $region49: #{tpu_custom_call.1} parent=1 // pred_fallthru
      _
    // Predicated region
    $region50: #{tpu_custom_call.1} parent=1 // pred_check
      _
    $region51: #{tpu_custom_call.1} parent=1 // pred_check_branch
      %109 = sbr.rel (0) target = $region53
    $region52: #{tpu_custom_call.1} parent=1 // pred_region
      %111 = dma.done [#allocation10], 2048
    $region53: #{tpu_custom_call.1} parent=1 // pred_fallthru
      _
    // Predicated region
    $region54: #{tpu_custom_call.1} parent=1 // pred_check
      _
    $region55: #{tpu_custom_call.1} parent=1 // pred_check_branch
      %113 = sbr.rel (0) target = $region57
    $region56: #{tpu_custom_call.1} parent=1 // pred_region
      %115 = dma.done [#allocation10], 2048
    $region57: #{tpu_custom_call.1} parent=1 // pred_fallthru
      _
    %v116 = vld [vmem:[#allocation3] sm:$0xff]
    %v117 = vld [vmem:[#allocation3 + $0x8] sm:$0xff]
    %120 = vst [vmem:[#allocation1] ss:$2 sm:$0xff] %v116
    %v121 = vld.sshfl [vmem:[#allocation1] sm:$0xff pattern:$0x75316420]
    %v122 = vld.sshfl [vmem:[#allocation1 + $0x8] sm:$0xff pattern:$0x75316420]
    %s123 = scalar_lea.vmem [#allocation1], 16
    %124 = vst [vmem:[%s123] ss:$2 sm:$0xff] %v117
    %v125 = vld.sshfl [vmem:[#allocation1 + $0x10] sm:$0xff pattern:$0x75316420]
    %v126 = vld.sshfl [vmem:[#allocation1 + $0x18] sm:$0xff pattern:$0x75316420]
    %vm131 = vcmask 1043456
    %v132 = vsel %vm131, %v121, 0.0
    %v133 = vrot.slane %v132, 4
    %v134 = vadd.f32 %v132, %v133
    %v135 = vrot.slane %v134, 2
    %v136 = vadd.f32 %v134, %v135
    %v137 = vrot.slane %v136, 1
    %v138 = vadd.f32 %v136, %v137
    %v139 = vsel %vm131, %v122, 0.0
    %v140 = vrot.slane %v139, 4
    %v141 = vadd.f32 %v139, %v140
    %v142 = vrot.slane %v141, 2
    %v143 = vadd.f32 %v141, %v142
    %v144 = vrot.slane %v143, 1
    %v145 = vadd.f32 %v143, %v144
    %v146 = vsel %vm131, %v125, 0.0
    %v147 = vrot.slane %v146, 4
    %v148 = vadd.f32 %v146, %v147
    %v149 = vrot.slane %v148, 2
    %v150 = vadd.f32 %v148, %v149
    %v151 = vrot.slane %v150, 1
    %v152 = vadd.f32 %v150, %v151
    %v153 = vsel %vm131, %v126, 0.0
    %v154 = vrot.slane %v153, 4
    %v155 = vadd.f32 %v153, %v154
    %v156 = vrot.slane %v155, 2
    %v157 = vadd.f32 %v155, %v156
    %v158 = vrot.slane %v157, 1
    %v159 = vadd.f32 %v157, %v158
    %v160 = vrcp.pop 4.0
    %v161 = vmul.f32 4.0, %v160
    %v162 = vsub.f32 1.0, %v161
    %v163 = vmul.f32 %v160, %v162
    %v164 = vadd.f32 %v160, %v163
    %vm165 = vweird.f32 %v160
    %v166 = vsel %vm165, %v160, %v164
    %v167 = vmul.f32 %v138, %v166
    %v168 = vmul.f32 %v145, %v166
    %v169 = vmul.f32 %v152, %v166
    %v170 = vmul.f32 %v159, %v166
    %v171 = vld [vmem:[#allocation8] sm:$0xff]
    %v172 = vld [vmem:[#allocation8 + $0x8] sm:$0xff]
    %v173 = vld [vmem:[#allocation8 + $0x10] sm:$0xff]
    %v174 = vld [vmem:[#allocation8 + $0x18] sm:$0xff]
    %v175 = vld [vmem:[#allocation8 + $0x20] sm:$0xff]
    %v176 = vld [vmem:[#allocation8 + $0x28] sm:$0xff]
    %v177 = vld [vmem:[#allocation8 + $0x30] sm:$0xff]
    %v178 = vld [vmem:[#allocation8 + $0x38] sm:$0xff]
    %v179 = vld [vmem:[#allocation8 + $0x40] sm:$0xff]
    %v180 = vld [vmem:[#allocation8 + $0x48] sm:$0xff]
    %v181 = vld [vmem:[#allocation8 + $0x50] sm:$0xff]
    %v182 = vld [vmem:[#allocation8 + $0x58] sm:$0xff]
    %v183 = vld [vmem:[#allocation8 + $0x60] sm:$0xff]
    %v184 = vld [vmem:[#allocation8 + $0x68] sm:$0xff]
    %v185 = vld [vmem:[#allocation8 + $0x70] sm:$0xff]
    %v186 = vld [vmem:[#allocation8 + $0x78] sm:$0xff]
    %v187 = vld [vmem:[#allocation8 + $0x80] sm:$0xff]
    %v188 = vld [vmem:[#allocation8 + $0x88] sm:$0xff]
    %v189 = vld [vmem:[#allocation8 + $0x90] sm:$0xff]
    %v190 = vld [vmem:[#allocation8 + $0x98] sm:$0xff]
    %v191 = vld [vmem:[#allocation8 + $0xa0] sm:$0xff]
    %v192 = vld [vmem:[#allocation8 + $0xa8] sm:$0xff]
    %v193 = vld [vmem:[#allocation8 + $0xb0] sm:$0xff]
    %v194 = vld [vmem:[#allocation8 + $0xb8] sm:$0xff]
    %v195 = vld [vmem:[#allocation8 + $0xc0] sm:$0xff]
    %v196 = vld [vmem:[#allocation8 + $0xc8] sm:$0xff]
    %v197 = vld [vmem:[#allocation8 + $0xd0] sm:$0xff]
    %v198 = vld [vmem:[#allocation8 + $0xd8] sm:$0xff]
    %v199 = vld [vmem:[#allocation8 + $0xe0] sm:$0xff]
    %v200 = vld [vmem:[#allocation8 + $0xe8] sm:$0xff]
    %v201 = vld [vmem:[#allocation8 + $0xf0] sm:$0xff]
    %v202 = vld [vmem:[#allocation8 + $0xf8] sm:$0xff]
    %v203 = vld [vmem:[%s3] sm:$0x1]
    %v205 = vperm.slane %v203, 0
    %vm211 = vcmask 1041409
    %v212 = vsel %vm211, %v169, %v167
    %v213 = vsel %vm211, %v170, %v168
    %216 = vmatpush.msra.mxu0 %v186
    %217 = vmatpush.msra.mxu0 %v185
    %218 = vmatpush.msra.mxu0 %v184
    %219 = vmatpush.msra.mxu0 %v183
    %220 = vmatpush.msra.mxu0 %v182
    %221 = vmatpush.msra.mxu0 %v181
    %222 = vmatpush.msra.mxu0 %v180
    %223 = vmatpush.msra.mxu0 %v179
    %224 = vmatpush.msra.mxu0 %v178
    %225 = vmatpush.msra.mxu0 %v177
    %226 = vmatpush.msra.mxu0 %v176
    %227 = vmatpush.msra.mxu0 %v175
    %228 = vmatpush.msra.mxu0 %v174
    %229 = vmatpush.msra.mxu0 %v173
    %230 = vmatpush.msra.mxu0 %v172
    %231 = vmatpush.msra.mxu0 %v171
    %232 = vmatmul.f32.gmra.mxu0 %v212
    %v233 = vpop.f32.mrf.mxu0
    %v234 = vadd.f32 %v205, %v233
    %235 = vdwg.mxu0
    %236 = vmatpush.msra.mxu0 %v202
    %237 = vmatpush.msra.mxu0 %v201
    %238 = vmatpush.msra.mxu0 %v200
    %239 = vmatpush.msra.mxu0 %v199
    %240 = vmatpush.msra.mxu0 %v198
    %241 = vmatpush.msra.mxu0 %v197
    %242 = vmatpush.msra.mxu0 %v196
    %243 = vmatpush.msra.mxu0 %v195
    %244 = vmatpush.msra.mxu0 %v194
    %245 = vmatpush.msra.mxu0 %v193
    %246 = vmatpush.msra.mxu0 %v192
    %247 = vmatpush.msra.mxu0 %v191
    %248 = vmatpush.msra.mxu0 %v190
    %249 = vmatpush.msra.mxu0 %v189
    %250 = vmatpush.msra.mxu0 %v188
    %251 = vmatpush.msra.mxu0 %v187
    %252 = vmatmul.f32.gmra.mxu0 %v213
    %v253 = vpop.f32.mrf.mxu0
    %v254 = vadd.f32 %v234, %v253
    %255 = vdwg.mxu0
    %v256 = vld [vmem:[#allocation6] sm:$0xff]
    %v257 = vld [vmem:[#allocation6 + $0x8] sm:$0xff]
    %v258 = vrot.slane %v256, 4
    %v259 = vadd.f32 %v256, %v258
    %v260 = vrot.slane %v259, 2
    %v261 = vadd.f32 %v259, %v260
    %v262 = vrot.slane %v261, 1
    %v263 = vadd.f32 %v261, %v262
    %v264 = vrot.slane %v257, 4
    %v265 = vadd.f32 %v257, %v264
    %v266 = vrot.slane %v265, 2
    %v267 = vadd.f32 %v265, %v266
    %v268 = vrot.slane %v267, 1
    %v269 = vadd.f32 %v267, %v268
    %v270 = vrcp.pop 8.0
    %v271 = vmul.f32 8.0, %v270
    %v272 = vsub.f32 1.0, %v271
    %v273 = vmul.f32 %v270, %v272
    %v274 = vadd.f32 %v270, %v273
    %vm275 = vweird.f32 %v270
    %v276 = vsel %vm275, %v270, %v274
    %v277 = vmul.f32 %v263, %v276
    %v278 = vmul.f32 %v269, %v276
    %v279 = vld [vmem:[#allocation9] sm:$0xff]
    %v280 = vld [vmem:[#allocation9 + $0x8] sm:$0xff]
    %v281 = vld [vmem:[#allocation9 + $0x10] sm:$0xff]
    %v282 = vld [vmem:[#allocation9 + $0x18] sm:$0xff]
    %v283 = vld [vmem:[#allocation9 + $0x20] sm:$0xff]
    %v284 = vld [vmem:[#allocation9 + $0x28] sm:$0xff]
    %v285 = vld [vmem:[#allocation9 + $0x30] sm:$0xff]
    %v286 = vld [vmem:[#allocation9 + $0x38] sm:$0xff]
    %v287 = vld [vmem:[#allocation9 + $0x40] sm:$0xff]
    %v288 = vld [vmem:[#allocation9 + $0x48] sm:$0xff]
    %v289 = vld [vmem:[#allocation9 + $0x50] sm:$0xff]
    %v290 = vld [vmem:[#allocation9 + $0x58] sm:$0xff]
    %v291 = vld [vmem:[#allocation9 + $0x60] sm:$0xff]
    %v292 = vld [vmem:[#allocation9 + $0x68] sm:$0xff]
    %v293 = vld [vmem:[#allocation9 + $0x70] sm:$0xff]
    %v294 = vld [vmem:[#allocation9 + $0x78] sm:$0xff]
    %v295 = vld [vmem:[%s5] sm:$0x1]
    %v297 = vperm.slane %v295, 0
    %v301 = vsel %vm211, %v278, %v277
    %303 = vmatpush.msra.mxu0 %v294
    %304 = vmatpush.msra.mxu0 %v293
    %305 = vmatpush.msra.mxu0 %v292
    %306 = vmatpush.msra.mxu0 %v291
    %307 = vmatpush.msra.mxu0 %v290
    %308 = vmatpush.msra.mxu0 %v289
    %309 = vmatpush.msra.mxu0 %v288
    %310 = vmatpush.msra.mxu0 %v287
    %311 = vmatpush.msra.mxu0 %v286
    %312 = vmatpush.msra.mxu0 %v285
    %313 = vmatpush.msra.mxu0 %v284
    %314 = vmatpush.msra.mxu0 %v283
    %315 = vmatpush.msra.mxu0 %v282
    %316 = vmatpush.msra.mxu0 %v281
    %317 = vmatpush.msra.mxu0 %v280
    %318 = vmatpush.msra.mxu0 %v279
    %319 = vmatmul.f32.gmra.mxu0 %v301
    %v320 = vpop.f32.mrf.mxu0
    %v321 = vadd.f32 %v297, %v320
    %322 = vdwg.mxu0
    %v323 = vld [vmem:[#allocation11] sm:$0xff]
    %v324 = vld [vmem:[#allocation11 + $0x8] sm:$0xff]
    %v325 = vld [vmem:[#allocation11 + $0x10] sm:$0xff]
    %v326 = vld [vmem:[#allocation11 + $0x18] sm:$0xff]
    %v327 = vld [vmem:[#allocation11 + $0x20] sm:$0xff]
    %v328 = vld [vmem:[#allocation11 + $0x28] sm:$0xff]
    %v329 = vld [vmem:[#allocation11 + $0x30] sm:$0xff]
    %v330 = vld [vmem:[#allocation11 + $0x38] sm:$0xff]
    %v331 = vld [vmem:[#allocation11 + $0x40] sm:$0xff]
    %v332 = vld [vmem:[#allocation11 + $0x48] sm:$0xff]
    %v333 = vld [vmem:[#allocation11 + $0x50] sm:$0xff]
    %v334 = vld [vmem:[#allocation11 + $0x58] sm:$0xff]
    %v335 = vld [vmem:[#allocation11 + $0x60] sm:$0xff]
    %v336 = vld [vmem:[#allocation11 + $0x68] sm:$0xff]
    %v337 = vld [vmem:[#allocation11 + $0x70] sm:$0xff]
    %v338 = vld [vmem:[#allocation11 + $0x78] sm:$0xff]
    %v339 = vld [vmem:[%s7] sm:$0x1]
    %v341 = vperm.slane %v339, 0
    %343 = vmatpush.msra.mxu0 %v338
    %344 = vmatpush.msra.mxu0 %v337
    %345 = vmatpush.msra.mxu0 %v336
    %346 = vmatpush.msra.mxu0 %v335
    %347 = vmatpush.msra.mxu0 %v334
    %348 = vmatpush.msra.mxu0 %v333
    %349 = vmatpush.msra.mxu0 %v332
    %350 = vmatpush.msra.mxu0 %v331
    %351 = vmatpush.msra.mxu0 %v330
    %352 = vmatpush.msra.mxu0 %v329
    %353 = vmatpush.msra.mxu0 %v328
    %354 = vmatpush.msra.mxu0 %v327
    %355 = vmatpush.msra.mxu0 %v326
    %356 = vmatpush.msra.mxu0 %v325
    %357 = vmatpush.msra.mxu0 %v324
    %358 = vmatpush.msra.mxu0 %v323
    %359 = vmatmul.f32.gmra.mxu0 %v254
    %v360 = vpop.f32.mrf.mxu0
    %v361 = vadd.f32 %v341, %v360
    %362 = vdwg.mxu0
    %v363 = vmul.f32 %v361, %v361
    %vm364 = vcmask 1041408
    %v365 = vsel %vm364, %v363, 0.0
    %366 = vadd.xlane.f32.xlu0 %v365
    %v367 = vpop.xlane.xlu0 %366
    %v368 = vrsqrt.pop %v367
    %v369 = vmul.f32 %v368, %v367
    %v370 = vmul.f32 %v369, %v368
    %v371 = vmul.f32 0.5, %v370
    %v372 = vsub.f32 1.5, %v371
    %v373 = vmul.f32 %v368, %v372
    %vm374 = vweird.f32 %v367
    %vm375 = vweird.f32 %v368
    %vm376 = vmor %vm374, %vm375
    %v377 = vsel %vm376, %v368, %v373
    %v378 = vmul.f32 %v361, %v377
    %v379 = vmul.f32 %v321, %v321
    %v380 = vsel %vm364, %v379, 0.0
    %381 = vadd.xlane.f32.xlu0 %v380
    %v382 = vpop.xlane.xlu0 %381
    %v383 = vrsqrt.pop %v382
    %v384 = vmul.f32 %v383, %v382
    %v385 = vmul.f32 %v384, %v383
    %v386 = vmul.f32 0.5, %v385
    %v387 = vsub.f32 1.5, %v386
    %v388 = vmul.f32 %v383, %v387
    %vm389 = vweird.f32 %v382
    %vm390 = vweird.f32 %v383
    %vm391 = vmor %vm389, %vm390
    %v392 = vsel %vm391, %v383, %v388
    %v393 = vmul.f32 %v321, %v392
    %s394 = sld [smem:[#allocation2]]
    %v395 = vstv %s394
    %v396 = vmul.f32 %v395, 1.442695
    %v397 = vpow.pop %v396
    %s398 = vtos %v397
    %399 = vmatpush.xpose.msra.mxu0 0.0
    %400 = vmatpush.xpose.msra.mxu0 0.0
    %401 = vmatpush.xpose.msra.mxu0 0.0
    %402 = vmatpush.xpose.msra.mxu0 0.0
    %403 = vmatpush.xpose.msra.mxu0 0.0
    %404 = vmatpush.xpose.msra.mxu0 0.0
    %405 = vmatpush.xpose.msra.mxu0 0.0
    %406 = vmatpush.xpose.msra.mxu0 0.0
    %407 = vmatpush.xpose.msra.mxu0 0.0
    %408 = vmatpush.xpose.msra.mxu0 0.0
    %409 = vmatpush.xpose.msra.mxu0 0.0
    %410 = vmatpush.xpose.msra.mxu0 0.0
    %411 = vmatpush.xpose.msra.mxu0 0.0
    %412 = vmatpush.xpose.msra.mxu0 0.0
    %413 = vmatpush.xpose.msra.mxu0 0.0
    %414 = vmatpush.xpose.msra.mxu0 %v393
    %415 = vmatmul.f32.gmra.mxu0 %v378
    %v416 = vpop.f32.mrf.mxu0
    %v417 = vadd.f32 0.0, %v416
    %418 = vdwg.mxu0
    %v419 = vstv %s398
    %v420 = vmul.f32 %v419, %v417
    %vm421 = vcmask 9216
    %422 = vst.msk [vmem:[#allocation12] sm:$0x3] %vm421, %v420
    %423 = vst [vmem:[#allocation13] sm:$0x3] %v378
    %424 = vst [vmem:[#allocation15] sm:$0x3] %v393
    // Predicated region
    $region58: #{tpu_custom_call.1} parent=1 // pred_check
      _
    $region59: #{tpu_custom_call.1} parent=1 // pred_check_branch
      %426 = sbr.rel (0) target = $region61
    $region60: #{tpu_custom_call.1} parent=1 // pred_region
      %428 = vsyncadd [#allocation5], 0
      %s430 = sshll.u32 [#allocation12], 4
      %s431 = int_to_ptr.vmem [resolvable:$true] %s430
      %s432 = sshll.u32 %s9, 4
      %s433 = int_to_ptr.hbm [resolvable:$true] %s432
      %435 = dma.vmem_to_hbm [thread:$0]  %s431, 32, %s433, [#allocation5]
    $region61: #{tpu_custom_call.1} parent=1 // pred_fallthru
      _
    // Predicated region
    $region62: #{tpu_custom_call.1} parent=1 // pred_check
      _
    $region63: #{tpu_custom_call.1} parent=1 // pred_check_branch
      %437 = sbr.rel (0) target = $region65
    $region64: #{tpu_custom_call.1} parent=1 // pred_region
      %439 = vsyncadd [#allocation14], 0
      %s441 = sshll.u32 [#allocation13], 4
      %s442 = int_to_ptr.vmem [resolvable:$true] %s441
      %s443 = sshll.u32 %s10, 4
      %s444 = int_to_ptr.hbm [resolvable:$true] %s443
      %446 = dma.vmem_to_hbm [thread:$0]  %s442, 32, %s444, [#allocation14]
    $region65: #{tpu_custom_call.1} parent=1 // pred_fallthru
      _
    // Predicated region
    $region66: #{tpu_custom_call.1} parent=1 // pred_check
      _
    $region67: #{tpu_custom_call.1} parent=1 // pred_check_branch
      %448 = sbr.rel (0) target = $region69
    $region68: #{tpu_custom_call.1} parent=1 // pred_region
      %450 = vsyncadd [#allocation14], 0
      %s452 = sshll.u32 [#allocation15], 4
      %s453 = int_to_ptr.vmem [resolvable:$true] %s452
      %s454 = sshll.u32 %s11, 4
      %s455 = int_to_ptr.hbm [resolvable:$true] %s454
      %457 = dma.vmem_to_hbm [thread:$0]  %s453, 32, %s455, [#allocation14]
    $region69: #{tpu_custom_call.1} parent=1 // pred_fallthru
      _
    // Predicated region
    $region70: #{tpu_custom_call.1} parent=1 // pred_check
      _
    $region71: #{tpu_custom_call.1} parent=1 // pred_check_branch
      %459 = sbr.rel (0) target = $region73
    $region72: #{tpu_custom_call.1} parent=1 // pred_region
      %461 = dma.done [#allocation5], 32
    $region73: #{tpu_custom_call.1} parent=1 // pred_fallthru
      _
    // Predicated region
    $region74: #{tpu_custom_call.1} parent=1 // pred_check
      _
    $region75: #{tpu_custom_call.1} parent=1 // pred_check_branch
      %463 = sbr.rel (0) target = $region77
    $region76: #{tpu_custom_call.1} parent=1 // pred_region
      %465 = dma.done [#allocation14], 32
    $region77: #{tpu_custom_call.1} parent=1 // pred_fallthru
      _
    // Predicated region
    $region78: #{tpu_custom_call.1} parent=1 // pred_check
      _
    $region79: #{tpu_custom_call.1} parent=1 // pred_check_branch
      %467 = sbr.rel (0) target = $region81
    $region80: #{tpu_custom_call.1} parent=1 // pred_region
      %469 = dma.done [#allocation14], 32
    $region81: #{tpu_custom_call.1} parent=1 // pred_fallthru
      _
    %470 = vsyncpa [#allocation4], 1
    %471 = vsyncpa [#allocation7], 1
    %472 = vsyncpa [#allocation10], 1
    %473 = vsyncpa [#allocation5], 1
    %474 = vsyncpa [#allocation14], 1

</llo_original>
